<compile_context>
chip_gen: v6e
topology: v6e:2x2x1
jax: 0.10.0
libtpu: 0.0.40
codegen_flags: <defaults>
</compile_context>

<pallas_src>
import functools

import jax
import jax.numpy as jnp
import numpy as np
from jax.experimental import pallas as pl
from jax.experimental.pallas import tpu as pltpu


def _round_up(n, m):
    return ((n + m - 1) // m) * m


def _nbytes(a):
    return a.size * a.dtype.itemsize


# ---------------------------------------------------------------------------
# Kernel body: an unrolled stack of Linear(+ReLU) layers on one batch tile.
# refs = (x, w0, b0, w1, b1, ..., w_{L-1}, b_{L-1}, out)
# ---------------------------------------------------------------------------
def _mlp_stack_kernel(*refs, n_layers, final_no_act):
    x_ref = refs[0]
    o_ref = refs[-1]
    p = refs[1:-1]

    # Activations stay f32; only matmul operands are cast to the weight dtype
    # (bf16 path) so quantization error does not compound with depth.
    h = x_ref[...].astype(jnp.float32)
    for i in range(n_layers):                      # unrolled at trace time
        w = p[2 * i][...]
        b = p[2 * i + 1][...]
        y = jnp.dot(h.astype(w.dtype), w, preferred_element_type=jnp.float32)
        y = y + b.astype(jnp.float32)              # f32 epilogue (v5e-safe)
        if not (final_no_act and i == n_layers - 1):
            y = jnp.maximum(y, 0.0)                # ReLU on all but the final layer
        h = y
    o_ref[...] = h.astype(o_ref.dtype)


# ---------------------------------------------------------------------------
# Parameters
# ---------------------------------------------------------------------------
def init_mlp_params(key, input_dim, dim, output_dim, n_blk, dtype=jnp.float32):
    """Same shapes as the PyTorch module; weights stored as (Din, Dout) == W.T."""
    dims = [input_dim, dim] + [dim] * n_blk + [output_dim]
    params = []
    for i in range(len(dims) - 1):
        key, kw, kb = jax.random.split(key, 3)
        bound = 1.0 / float(dims[i]) ** 0.5
        w = jax.random.uniform(kw, (dims[i], dims[i + 1]), dtype,
                               minval=-bound, maxval=bound)
        b = jax.random.uniform(kb, (1, dims[i + 1]), dtype,
                               minval=-bound, maxval=bound)
        params.append((w, b))
    return params


def prepare_params(params, compute_dtype=jnp.float32):
    """Zero-pad hidden/output feature dims to 128-lane multiples (lane-dense,
    unmasked stores) and cast weights to the matmul compute dtype.  bf16 runs at
    full MXU rate on v5e as well as v6e/v7x and halves weight HBM/VMEM bytes.
    Biases stay f32 for the f32 VPU epilogue.  Zero padding is exact through
    Linear(+ReLU).  The first layer's input dim is left unpadded so x needs no
    wrapper-side pad pass."""
    out = []
    for idx, (w, b) in enumerate(params):
        din, dout = w.shape
        din_p = din if idx == 0 else _round_up(din, 128)
        dout_p = _round_up(dout, 128)
        w_p = jnp.pad(w, ((0, din_p - din), (0, dout_p - dout))).astype(compute_dtype)
        b_p = jnp.pad(b, ((0, 0), (0, dout_p - dout))).astype(jnp.float32)
        out.append((w_p, b_p))
    return out


# ---------------------------------------------------------------------------
# One fused pallas_call over a chunk of consecutive layers.
# ---------------------------------------------------------------------------
def _fused_stack_call(h, layers, *, final_no_act, out_dtype, block_b):
    B, din = h.shape
    dout = layers[-1][0].shape[1]

    # Batch tile: whole batch if it fits one tile (block == full array dim is a
    # legal sublane shape), else a multiple-of-8 tile; a non-divisible B is
    # handled by the cdiv grid's partial last tile -- no wrapper-side batch pad.
    assert block_b % 8 == 0
    tb = B if B <= block_b else block_b
    grid = (pl.cdiv(B, tb),)

    out_itemsize = np.dtype(out_dtype).itemsize
    widest = max([din] + [w.shape[1] for w, _ in layers])

    def build(param_buffers):
        flat = [h]
        in_specs = [pl.BlockSpec((tb, din), lambda i: (i, 0))]
        for w, b in layers:
            flat += [w, b]
            if param_buffers == 1:
                # Constant index_map + single buffer: fetched once, VMEM-resident.
                in_specs.append(pl.BlockSpec(w.shape, lambda i: (0, 0),
                                             pipeline_mode=pl.Buffered(1)))
                in_specs.append(pl.BlockSpec(b.shape, lambda i: (0, 0),
                                             pipeline_mode=pl.Buffered(1)))
            else:
                in_specs.append(pl.BlockSpec(w.shape, lambda i: (0, 0)))
                in_specs.append(pl.BlockSpec(b.shape, lambda i: (0, 0)))

        # Scoped-VMEM budget: resident params x buffer count + double-buffered
        # activation tiles + a few f32 temporaries, with headroom.
        param_bytes = sum(_nbytes(w) + _nbytes(b) for w, b in layers) * param_buffers
        act_bytes = 2 * tb * din * h.dtype.itemsize + 2 * tb * dout * out_itemsize
        tmp_bytes = 4 * tb * widest * 4
        need = param_bytes + act_bytes + tmp_bytes
        vmem_limit = int(min(max(32 << 20, int(need * 1.5) + (2 << 20)), 56 << 20))

        flops = 2 * B * sum(w.shape[0] * w.shape[1] for w, _ in layers)
        bytes_accessed = (_nbytes(h) + B * dout * out_itemsize
                          + sum(_nbytes(w) + _nbytes(b) for w, b in layers))

        call = pl.pallas_call(
            functools.partial(_mlp_stack_kernel, n_layers=len(layers),
                              final_no_act=final_no_act),
            out_shape=jax.ShapeDtypeStruct((B, dout), out_dtype),
            grid=grid,
            in_specs=in_specs,
            out_specs=pl.BlockSpec((tb, dout), lambda i: (i, 0)),
            compiler_params=pltpu.CompilerParams(
                dimension_semantics=("parallel",),        # batch tiles across TCs
                vmem_limit_bytes=vmem_limit),
            cost_estimate=pl.CostEstimate(flops=flops, transcendentals=0,
                                          bytes_accessed=bytes_accessed),
        )
        return call, flat

    try:
        call, flat = build(param_buffers=1)   # single-buffered resident params
        return call(*flat)
    except Exception:
        call, flat = build(param_buffers=2)   # fallback: default double-buffering
        return call(*flat)


# ---------------------------------------------------------------------------
# Forward pass
# ---------------------------------------------------------------------------
def mlp_forward(x, padded_params, output_dim, *, block_b=512,
                out_dtype=jnp.float32, resident_param_budget=40 << 20):
    """Fused forward: one pallas_call per chunk of layers whose resident
    (single-buffered) weights fit the per-TC VMEM budget; for typical MLP sizes
    this is a single call for the whole network (hidden activations never touch
    HBM)."""
    B = x.shape[0]
    h = x.reshape(B, -1)     # x.view(x.size(0), -1); dtype cast happens per-tile in-kernel

    # Greedy chunking against the per-TC resident-weight budget (v7x: 64 MiB/TC
    # and each TC holds its own copy under dimension_semantics=('parallel',)).
    chunks, cur, cur_bytes = [], [], 0
    for layer in padded_params:
        lb = _nbytes(layer[0]) + _nbytes(layer[1])
        if cur and cur_bytes + lb > resident_param_budget:
            chunks.append(cur)
            cur, cur_bytes = [], 0
        cur.append(layer)
        cur_bytes += lb
    chunks.append(cur)
    # TODO(synk): if a single layer alone exceeds the budget, K/N-tile it inside
    # the body with pltpu.emit_pipeline instead of relying on chunking.

    for ci, chunk in enumerate(chunks):
        last = ci == len(chunks) - 1
        h = _fused_stack_call(
            h, chunk,
            final_no_act=last,                           # no ReLU after the final layer
            out_dtype=out_dtype if last else jnp.float32,
            block_b=block_b)

    # Strip the lane padding of the final layer back to the logical width.
    return h[:, :output_dim]


if __name__ == "__main__":
    # Small shapes consistent with the module: x (B=2, C=4, H=4, W=4) -> input_dim=64.
    B, C, H, W = 2, 4, 4, 4
    input_dim = C * H * W
    dim = 32
    output_dim = 8
    n_blk = 2

    key = jax.random.PRNGKey(0)
    kx, kp = jax.random.split(key)
    x = jax.random.normal(kx, (B, C, H, W), dtype=jnp.float32)
    params = init_mlp_params(kp, input_dim, dim, output_dim, n_blk)

    # Plain-JAX reference of the same forward pass.
    h_ref = x.reshape(B, -1)
    for idx, (w, b) in enumerate(params):
        h_ref = h_ref @ w + b
        if idx != len(params) - 1:
            h_ref = jnp.maximum(h_ref, 0.0)

    # f32 path: exact match to the reference.
    p_f32 = prepare_params(params, jnp.float32)
    out_f32 = jax.block_until_ready(mlp_forward(x, p_f32, output_dim))
    assert out_f32.shape == (B, output_dim)
    assert jnp.allclose(out_f32, h_ref, atol=1e-5, rtol=1e-5)

    # bf16 matmul path (full MXU rate on v5e/v6e/v7x): weights bf16, activations
    # and epilogue f32, bf16 output for a mem-bound downstream consumer.
    p_bf16 = prepare_params(params, jnp.bfloat16)
    out_bf16 = jax.block_until_ready(
        mlp_forward(x, p_bf16, output_dim, out_dtype=jnp.bfloat16))
    assert out_bf16.shape == (B, output_dim)
    assert jnp.allclose(out_bf16.astype(jnp.float32), h_ref, atol=5e-2, rtol=5e-2)

    print("KERNEL_OK")
</pallas_src>

<mosaic_0001>
module attributes {stable_mosaic.version = 11 : i64} {
  func.func @_mlp_stack_kernel(%arg0: i32, %arg1: memref<2x64xf32, #tpu.memory_space<vmem>>, %arg2: memref<64x128xf32, #tpu.memory_space<vmem>>, %arg3: memref<1x128xf32, #tpu.memory_space<vmem>>, %arg4: memref<128x128xf32, #tpu.memory_space<vmem>>, %arg5: memref<1x128xf32, #tpu.memory_space<vmem>>, %arg6: memref<128x128xf32, #tpu.memory_space<vmem>>, %arg7: memref<1x128xf32, #tpu.memory_space<vmem>>, %arg8: memref<128x128xf32, #tpu.memory_space<vmem>>, %arg9: memref<1x128xf32, #tpu.memory_space<vmem>>, %arg10: memref<2x128xf32, #tpu.memory_space<vmem>>) attributes {dimension_semantics = [#tpu.dimension_semantics<parallel>], iteration_bounds = array<i64: 1>, scalar_prefetch = 0 : i64, scratch_operands = 0 : i64, tpu.core_type = #tpu.core_type<tc>, window_params = [{transform_indices = @transform_0, window_bounds = array<i64: 2, 64>}, {pipeline_mode = #tpu.pipeline_mode<synchronous>, transform_indices = @transform_1, window_bounds = array<i64: 64, 128>}, {pipeline_mode = #tpu.pipeline_mode<synchronous>, transform_indices = @transform_2, window_bounds = array<i64: 1, 128>}, {pipeline_mode = #tpu.pipeline_mode<synchronous>, transform_indices = @transform_3, window_bounds = array<i64: 128, 128>}, {pipeline_mode = #tpu.pipeline_mode<synchronous>, transform_indices = @transform_4, window_bounds = array<i64: 1, 128>}, {pipeline_mode = #tpu.pipeline_mode<synchronous>, transform_indices = @transform_5, window_bounds = array<i64: 128, 128>}, {pipeline_mode = #tpu.pipeline_mode<synchronous>, transform_indices = @transform_6, window_bounds = array<i64: 1, 128>}, {pipeline_mode = #tpu.pipeline_mode<synchronous>, transform_indices = @transform_7, window_bounds = array<i64: 128, 128>}, {pipeline_mode = #tpu.pipeline_mode<synchronous>, transform_indices = @transform_8, window_bounds = array<i64: 1, 128>}, {transform_indices = @transform_9, window_bounds = array<i64: 2, 128>}]} {
    %c0 = arith.constant 0 : index
    %c0_0 = arith.constant 0 : index
    %0 = vector.load %arg1[%c0, %c0_0] : memref<2x64xf32, #tpu.memory_space<vmem>>, vector<2x64xf32>
    %c0_1 = arith.constant 0 : index
    %c0_2 = arith.constant 0 : index
    %1 = vector.load %arg2[%c0_1, %c0_2] : memref<64x128xf32, #tpu.memory_space<vmem>>, vector<64x128xf32>
    %c0_3 = arith.constant 0 : index
    %c0_4 = arith.constant 0 : index
    %2 = vector.load %arg3[%c0_3, %c0_4] : memref<1x128xf32, #tpu.memory_space<vmem>>, vector<1x128xf32>
    %cst = arith.constant dense<0.000000e+00> : vector<2x128xf32>
    %3 = tpu.matmul %0, %1, %cst {dimension_numbers = #tpu.dot_dimension_numbers<[1], [0], [0], [1], [0, 0, 1, 1], [], []>} : vector<2x64xf32>, vector<64x128xf32>, vector<2x128xf32> -> vector<2x128xf32>
    %4 = vector.broadcast %2 : vector<1x128xf32> to vector<2x128xf32>
    %5 = arith.addf %3, %4 : vector<2x128xf32>
    %cst_5 = arith.constant 0.000000e+00 : f32
    %6 = vector.broadcast %cst_5 : f32 to vector<2x128xf32>
    %7 = arith.maximumf %5, %6 : vector<2x128xf32>
    %c0_6 = arith.constant 0 : index
    %c0_7 = arith.constant 0 : index
    %8 = vector.load %arg4[%c0_6, %c0_7] : memref<128x128xf32, #tpu.memory_space<vmem>>, vector<128x128xf32>
    %c0_8 = arith.constant 0 : index
    %c0_9 = arith.constant 0 : index
    %9 = vector.load %arg5[%c0_8, %c0_9] : memref<1x128xf32, #tpu.memory_space<vmem>>, vector<1x128xf32>
    %cst_10 = arith.constant dense<0.000000e+00> : vector<2x128xf32>
    %10 = tpu.matmul %7, %8, %cst_10 {dimension_numbers = #tpu.dot_dimension_numbers<[1], [0], [0], [1], [0, 0, 1, 1], [], []>} : vector<2x128xf32>, vector<128x128xf32>, vector<2x128xf32> -> vector<2x128xf32>
    %11 = vector.broadcast %9 : vector<1x128xf32> to vector<2x128xf32>
    %12 = arith.addf %10, %11 : vector<2x128xf32>
    %cst_11 = arith.constant 0.000000e+00 : f32
    %13 = vector.broadcast %cst_11 : f32 to vector<2x128xf32>
    %14 = arith.maximumf %12, %13 : vector<2x128xf32>
    %c0_12 = arith.constant 0 : index
    %c0_13 = arith.constant 0 : index
    %15 = vector.load %arg6[%c0_12, %c0_13] : memref<128x128xf32, #tpu.memory_space<vmem>>, vector<128x128xf32>
    %c0_14 = arith.constant 0 : index
    %c0_15 = arith.constant 0 : index
    %16 = vector.load %arg7[%c0_14, %c0_15] : memref<1x128xf32, #tpu.memory_space<vmem>>, vector<1x128xf32>
    %cst_16 = arith.constant dense<0.000000e+00> : vector<2x128xf32>
    %17 = tpu.matmul %14, %15, %cst_16 {dimension_numbers = #tpu.dot_dimension_numbers<[1], [0], [0], [1], [0, 0, 1, 1], [], []>} : vector<2x128xf32>, vector<128x128xf32>, vector<2x128xf32> -> vector<2x128xf32>
    %18 = vector.broadcast %16 : vector<1x128xf32> to vector<2x128xf32>
    %19 = arith.addf %17, %18 : vector<2x128xf32>
    %cst_17 = arith.constant 0.000000e+00 : f32
    %20 = vector.broadcast %cst_17 : f32 to vector<2x128xf32>
    %21 = arith.maximumf %19, %20 : vector<2x128xf32>
    %c0_18 = arith.constant 0 : index
    %c0_19 = arith.constant 0 : index
    %22 = vector.load %arg8[%c0_18, %c0_19] : memref<128x128xf32, #tpu.memory_space<vmem>>, vector<128x128xf32>
    %c0_20 = arith.constant 0 : index
    %c0_21 = arith.constant 0 : index
    %23 = vector.load %arg9[%c0_20, %c0_21] : memref<1x128xf32, #tpu.memory_space<vmem>>, vector<1x128xf32>
    %cst_22 = arith.constant dense<0.000000e+00> : vector<2x128xf32>
    %24 = tpu.matmul %21, %22, %cst_22 {dimension_numbers = #tpu.dot_dimension_numbers<[1], [0], [0], [1], [0, 0, 1, 1], [], []>} : vector<2x128xf32>, vector<128x128xf32>, vector<2x128xf32> -> vector<2x128xf32>
    %25 = vector.broadcast %23 : vector<1x128xf32> to vector<2x128xf32>
    %26 = arith.addf %24, %25 : vector<2x128xf32>
    %c0_23 = arith.constant 0 : index
    %c0_24 = arith.constant 0 : index
    %27 = vector.load %arg10[%c0_23, %c0_24] : memref<2x128xf32, #tpu.memory_space<vmem>>, vector<2x128xf32>
    tpu.vector_store %arg10[%c0_23, %c0_24], %26 {strides = array<i32>} : memref<2x128xf32, #tpu.memory_space<vmem>>, vector<2x128xf32>,
    return
  }
  func.func @transform_0(%arg0: i32) -> (i32, i32) {
    %c0_i32 = arith.constant 0 : i32
    %c0_i32_0 = arith.constant 0 : i32
    return %arg0, %c0_i32 : i32, i32
  }
  func.func @transform_1(%arg0: i32) -> (i32, i32) {
    %c0_i32 = arith.constant 0 : i32
    %c0_i32_0 = arith.constant 0 : i32
    %c0_i32_1 = arith.constant 0 : i32
    return %c0_i32, %c0_i32_0 : i32, i32
  }
  func.func @transform_2(%arg0: i32) -> (i32, i32) {
    %c0_i32 = arith.constant 0 : i32
    %c0_i32_0 = arith.constant 0 : i32
    %c0_i32_1 = arith.constant 0 : i32
    return %c0_i32, %c0_i32_0 : i32, i32
  }
  func.func @transform_3(%arg0: i32) -> (i32, i32) {
    %c0_i32 = arith.constant 0 : i32
    %c0_i32_0 = arith.constant 0 : i32
    %c0_i32_1 = arith.constant 0 : i32
    return %c0_i32, %c0_i32_0 : i32, i32
  }
  func.func @transform_4(%arg0: i32) -> (i32, i32) {
    %c0_i32 = arith.constant 0 : i32
    %c0_i32_0 = arith.constant 0 : i32
    %c0_i32_1 = arith.constant 0 : i32
    return %c0_i32, %c0_i32_0 : i32, i32
  }
  func.func @transform_5(%arg0: i32) -> (i32, i32) {
    %c0_i32 = arith.constant 0 : i32
    %c0_i32_0 = arith.constant 0 : i32
    %c0_i32_1 = arith.constant 0 : i32
    return %c0_i32, %c0_i32_0 : i32, i32
  }
  func.func @transform_6(%arg0: i32) -> (i32, i32) {
    %c0_i32 = arith.constant 0 : i32
    %c0_i32_0 = arith.constant 0 : i32
    %c0_i32_1 = arith.constant 0 : i32
    return %c0_i32, %c0_i32_0 : i32, i32
  }
  func.func @transform_7(%arg0: i32) -> (i32, i32) {
    %c0_i32 = arith.constant 0 : i32
    %c0_i32_0 = arith.constant 0 : i32
    %c0_i32_1 = arith.constant 0 : i32
    return %c0_i32, %c0_i32_0 : i32, i32
  }
  func.func @transform_8(%arg0: i32) -> (i32, i32) {
    %c0_i32 = arith.constant 0 : i32
    %c0_i32_0 = arith.constant 0 : i32
    %c0_i32_1 = arith.constant 0 : i32
    return %c0_i32, %c0_i32_0 : i32, i32
  }
  func.func @transform_9(%arg0: i32) -> (i32, i32) {
    %c0_i32 = arith.constant 0 : i32
    %c0_i32_0 = arith.constant 0 : i32
    return %arg0, %c0_i32 : i32, i32
  }
}

module attributes {stable_mosaic.version = 11 : i64} {
  func.func @_mlp_stack_kernel(%arg0: i32, %arg1: memref<2x64xf32, #tpu.memory_space<vmem>>, %arg2: memref<64x128xf32, #tpu.memory_space<vmem>>, %arg3: memref<1x128xf32, #tpu.memory_space<vmem>>, %arg4: memref<128x128xf32, #tpu.memory_space<vmem>>, %arg5: memref<1x128xf32, #tpu.memory_space<vmem>>, %arg6: memref<128x128xf32, #tpu.memory_space<vmem>>, %arg7: memref<1x128xf32, #tpu.memory_space<vmem>>, %arg8: memref<128x128xf32, #tpu.memory_space<vmem>>, %arg9: memref<1x128xf32, #tpu.memory_space<vmem>>, %arg10: memref<2x128xf32, #tpu.memory_space<vmem>>) attributes {dimension_semantics = [#tpu.dimension_semantics<parallel>], iteration_bounds = array<i64: 1>, scalar_prefetch = 0 : i64, scratch_operands = 0 : i64, tpu.core_type = #tpu.core_type<tc>, window_params = [{transform_indices = @transform_0, window_bounds = array<i64: 2, 64>}, {pipeline_mode = #tpu.pipeline_mode<synchronous>, transform_indices = @transform_1, window_bounds = array<i64: 64, 128>}, {pipeline_mode = #tpu.pipeline_mode<synchronous>, transform_indices = @transform_2, window_bounds = array<i64: 1, 128>}, {pipeline_mode = #tpu.pipeline_mode<synchronous>, transform_indices = @transform_3, window_bounds = array<i64: 128, 128>}, {pipeline_mode = #tpu.pipeline_mode<synchronous>, transform_indices = @transform_4, window_bounds = array<i64: 1, 128>}, {pipeline_mode = #tpu.pipeline_mode<synchronous>, transform_indices = @transform_5, window_bounds = array<i64: 128, 128>}, {pipeline_mode = #tpu.pipeline_mode<synchronous>, transform_indices = @transform_6, window_bounds = array<i64: 1, 128>}, {pipeline_mode = #tpu.pipeline_mode<synchronous>, transform_indices = @transform_7, window_bounds = array<i64: 128, 128>}, {pipeline_mode = #tpu.pipeline_mode<synchronous>, transform_indices = @transform_8, window_bounds = array<i64: 1, 128>}, {transform_indices = @transform_9, window_bounds = array<i64: 2, 128>}]} {
    %c0 = arith.constant 0 : index
    %c0_0 = arith.constant 0 : index
    %0 = vector.load %arg1[%c0, %c0_0] : memref<2x64xf32, #tpu.memory_space<vmem>>, vector<2x64xf32>
    %c0_1 = arith.constant 0 : index
    %c0_2 = arith.constant 0 : index
    %1 = vector.load %arg2[%c0_1, %c0_2] : memref<64x128xf32, #tpu.memory_space<vmem>>, vector<64x128xf32>
    %c0_3 = arith.constant 0 : index
    %c0_4 = arith.constant 0 : index
    %2 = vector.load %arg3[%c0_3, %c0_4] : memref<1x128xf32, #tpu.memory_space<vmem>>, vector<1x128xf32>
    %cst = arith.constant dense<0.000000e+00> : vector<2x128xf32>
    %3 = tpu.matmul %0, %1, %cst {dimension_numbers = #tpu.dot_dimension_numbers<[1], [0], [0], [1], [0, 0, 1, 1], [], []>} : vector<2x64xf32>, vector<64x128xf32>, vector<2x128xf32> -> vector<2x128xf32>
    %4 = vector.broadcast %2 : vector<1x128xf32> to vector<2x128xf32>
    %5 = arith.addf %3, %4 : vector<2x128xf32>
    %cst_5 = arith.constant 0.000000e+00 : f32
    %6 = vector.broadcast %cst_5 : f32 to vector<2x128xf32>
    %7 = arith.maximumf %5, %6 : vector<2x128xf32>
    %c0_6 = arith.constant 0 : index
    %c0_7 = arith.constant 0 : index
    %8 = vector.load %arg4[%c0_6, %c0_7] : memref<128x128xf32, #tpu.memory_space<vmem>>, vector<128x128xf32>
    %c0_8 = arith.constant 0 : index
    %c0_9 = arith.constant 0 : index
    %9 = vector.load %arg5[%c0_8, %c0_9] : memref<1x128xf32, #tpu.memory_space<vmem>>, vector<1x128xf32>
    %cst_10 = arith.constant dense<0.000000e+00> : vector<2x128xf32>
    %10 = tpu.matmul %7, %8, %cst_10 {dimension_numbers = #tpu.dot_dimension_numbers<[1], [0], [0], [1], [0, 0, 1, 1], [], []>} : vector<2x128xf32>, vector<128x128xf32>, vector<2x128xf32> -> vector<2x128xf32>
    %11 = vector.broadcast %9 : vector<1x128xf32> to vector<2x128xf32>
    %12 = arith.addf %10, %11 : vector<2x128xf32>
    %cst_11 = arith.constant 0.000000e+00 : f32
    %13 = vector.broadcast %cst_11 : f32 to vector<2x128xf32>
    %14 = arith.maximumf %12, %13 : vector<2x128xf32>
    %c0_12 = arith.constant 0 : index
    %c0_13 = arith.constant 0 : index
    %15 = vector.load %arg6[%c0_12, %c0_13] : memref<128x128xf32, #tpu.memory_space<vmem>>, vector<128x128xf32>
    %c0_14 = arith.constant 0 : index
    %c0_15 = arith.constant 0 : index
    %16 = vector.load %arg7[%c0_14, %c0_15] : memref<1x128xf32, #tpu.memory_space<vmem>>, vector<1x128xf32>
    %cst_16 = arith.constant dense<0.000000e+00> : vector<2x128xf32>
    %17 = tpu.matmul %14, %15, %cst_16 {dimension_numbers = #tpu.dot_dimension_numbers<[1], [0], [0], [1], [0, 0, 1, 1], [], []>} : vector<2x128xf32>, vector<128x128xf32>, vector<2x128xf32> -> vector<2x128xf32>
    %18 = vector.broadcast %16 : vector<1x128xf32> to vector<2x128xf32>
    %19 = arith.addf %17, %18 : vector<2x128xf32>
    %cst_17 = arith.constant 0.000000e+00 : f32
    %20 = vector.broadcast %cst_17 : f32 to vector<2x128xf32>
    %21 = arith.maximumf %19, %20 : vector<2x128xf32>
    %c0_18 = arith.constant 0 : index
    %c0_19 = arith.constant 0 : index
    %22 = vector.load %arg8[%c0_18, %c0_19] : memref<128x128xf32, #tpu.memory_space<vmem>>, vector<128x128xf32>
    %c0_20 = arith.constant 0 : index
    %c0_21 = arith.constant 0 : index
    %23 = vector.load %arg9[%c0_20, %c0_21] : memref<1x128xf32, #tpu.memory_space<vmem>>, vector<1x128xf32>
    %cst_22 = arith.constant dense<0.000000e+00> : vector<2x128xf32>
    %24 = tpu.matmul %21, %22, %cst_22 {dimension_numbers = #tpu.dot_dimension_numbers<[1], [0], [0], [1], [0, 0, 1, 1], [], []>} : vector<2x128xf32>, vector<128x128xf32>, vector<2x128xf32> -> vector<2x128xf32>
    %25 = vector.broadcast %23 : vector<1x128xf32> to vector<2x128xf32>
    %26 = arith.addf %24, %25 : vector<2x128xf32>
    %c0_23 = arith.constant 0 : index
    %c0_24 = arith.constant 0 : index
    %27 = vector.load %arg10[%c0_23, %c0_24] : memref<2x128xf32, #tpu.memory_space<vmem>>, vector<2x128xf32>
    tpu.vector_store %arg10[%c0_23, %c0_24], %26 {strides = array<i32>} : memref<2x128xf32, #tpu.memory_space<vmem>>, vector<2x128xf32>,
    return
  }
  func.func @transform_0(%arg0: i32) -> (i32, i32) {
    %c0_i32 = arith.constant 0 : i32
    %c0_i32_0 = arith.constant 0 : i32
    return %arg0, %c0_i32 : i32, i32
  }
  func.func @transform_1(%arg0: i32) -> (i32, i32) {
    %c0_i32 = arith.constant 0 : i32
    %c0_i32_0 = arith.constant 0 : i32
    %c0_i32_1 = arith.constant 0 : i32
    return %c0_i32, %c0_i32_0 : i32, i32
  }
  func.func @transform_2(%arg0: i32) -> (i32, i32) {
    %c0_i32 = arith.constant 0 : i32
    %c0_i32_0 = arith.constant 0 : i32
    %c0_i32_1 = arith.constant 0 : i32
    return %c0_i32, %c0_i32_0 : i32, i32
  }
  func.func @transform_3(%arg0: i32) -> (i32, i32) {
    %c0_i32 = arith.constant 0 : i32
    %c0_i32_0 = arith.constant 0 : i32
    %c0_i32_1 = arith.constant 0 : i32
    return %c0_i32, %c0_i32_0 : i32, i32
  }
  func.func @transform_4(%arg0: i32) -> (i32, i32) {
    %c0_i32 = arith.constant 0 : i32
    %c0_i32_0 = arith.constant 0 : i32
    %c0_i32_1 = arith.constant 0 : i32
    return %c0_i32, %c0_i32_0 : i32, i32
  }
  func.func @transform_5(%arg0: i32) -> (i32, i32) {
    %c0_i32 = arith.constant 0 : i32
    %c0_i32_0 = arith.constant 0 : i32
    %c0_i32_1 = arith.constant 0 : i32
    return %c0_i32, %c0_i32_0 : i32, i32
  }
  func.func @transform_6(%arg0: i32) -> (i32, i32) {
    %c0_i32 = arith.constant 0 : i32
    %c0_i32_0 = arith.constant 0 : i32
    %c0_i32_1 = arith.constant 0 : i32
    return %c0_i32, %c0_i32_0 : i32, i32
  }
  func.func @transform_7(%arg0: i32) -> (i32, i32) {
    %c0_i32 = arith.constant 0 : i32
    %c0_i32_0 = arith.constant 0 : i32
    %c0_i32_1 = arith.constant 0 : i32
    return %c0_i32, %c0_i32_0 : i32, i32
  }
  func.func @transform_8(%arg0: i32) -> (i32, i32) {
    %c0_i32 = arith.constant 0 : i32
    %c0_i32_0 = arith.constant 0 : i32
    %c0_i32_1 = arith.constant 0 : i32
    return %c0_i32, %c0_i32_0 : i32, i32
  }
  func.func @transform_9(%arg0: i32) -> (i32, i32) {
    %c0_i32 = arith.constant 0 : i32
    %c0_i32_0 = arith.constant 0 : i32
    return %arg0, %c0_i32 : i32, i32
  }
}

</mosaic_0001>

<llo_original>
// kernel: tpu_custom_call.1
$region0: #{tpu_custom_call.1}
  #allocation0 [shape = 'u32[]', space=smem, size = 0x4, offset = 0x4, fixed_abs, tag = 'smem constant byte address 0x4 - core index']
  #allocation1 [shape = 'u32[144,128]{1,0:T(1,128)}', space=vmem, size = 0x12000, scoped, tag = 'internal scratch']
  %s0 = inlined_call_operand.hbm [shape: f32[2,64], index: 0, kind: input, shape index: {}]
  %s1 = inlined_call_operand.hbm [shape: f32[64,128], index: 1, kind: input, shape index: {}]
  %s2 = inlined_call_operand.vmem [shape: f32[1,128], index: 2, kind: input, shape index: {}]
  %s3 = inlined_call_operand.hbm [shape: f32[128,128], index: 3, kind: input, shape index: {}]
  %s4 = inlined_call_operand.vmem [shape: f32[1,128], index: 4, kind: input, shape index: {}]
  %s5 = inlined_call_operand.hbm [shape: f32[128,128], index: 5, kind: input, shape index: {}]
  %s6 = inlined_call_operand.vmem [shape: f32[1,128], index: 6, kind: input, shape index: {}]
  %s7 = inlined_call_operand.hbm [shape: f32[128,128], index: 7, kind: input, shape index: {}]
  %s8 = inlined_call_operand.vmem [shape: f32[1,128], index: 8, kind: input, shape index: {}]
  %s9 = inlined_call_operand.hbm [shape: f32[2,128], index: 9, kind: output, shape index: {}]
  %s10 = sld [smem:[#allocation0]]
  $region66: #{tpu_custom_call.1} parent=0
    _
  %s12 = ssub.s32 1, %s10
  %s13 = scalar_select 0, %s12, %s10
  $region1: #{tpu_custom_call.1} parent=0
    #allocation2 [shape = 'u8[1024]{0}', space=vmem, size = 0x400, scoped, tag = 'input window, operand 0, single buffered']
    #allocation3 [shape = 's32[1]{0}', space=sflag, size = 0x4, scoped, tag = 'scoped memory for tpu_custom_call.1']
    #allocation4 [shape = 's32[1]{0}', space=sflag, size = 0x4, scoped, tag = 'scoped memory for tpu_custom_call.1']
    #allocation5 [shape = 'u8[32768]{0}', space=vmem, size = 0x8000, scoped, tag = 'input window, operand 1, single buffered']
    #allocation6 [shape = 's32[1]{0}', space=sflag, size = 0x4, scoped, tag = 'scoped memory for tpu_custom_call.1']
    #allocation7 [shape = 'u8[65536]{0}', space=vmem, size = 0x10000, scoped, tag = 'input window, operand 3, single buffered']
    #allocation8 [shape = 'u8[65536]{0}', space=vmem, size = 0x10000, scoped, tag = 'input window, operand 5, single buffered']
    #allocation9 [shape = 's32[1]{0}', space=sflag, size = 0x4, scoped, tag = 'scoped memory for tpu_custom_call.1']
    #allocation10 [shape = 'u8[65536]{0}', space=vmem, size = 0x10000, scoped, tag = 'input window, operand 7, single buffered']
    #allocation11 [shape = 'u8[1024]{0}', space=vmem, size = 0x400, scoped, tag = 'output window, operand 0, single buffered']
    %14 = vsyncpa [#allocation3], 0
    %15 = vsyncpa [#allocation6], 0
    %16 = vsyncpa [#allocation9], 0
    %17 = vsyncpa [#allocation4], 0
    // Predicated region
    $region2: #{tpu_custom_call.1} parent=1 // pred_check
      _
    $region3: #{tpu_custom_call.1} parent=1 // pred_check_branch
      %19 = sbr.rel (0) target = $region5
    $region4: #{tpu_custom_call.1} parent=1 // pred_region
      %s21 = ssub.s32 32, 32
      %22 = vsyncadd [#allocation3], %s21
      %s24 = sshll.u32 [#allocation2], 4
      %s25 = int_to_ptr.vmem [resolvable:$true] %s24
      %27 = dma.hbm_to_vmem [thread:$0]  %s0, 32, %s25, [#allocation3]
    $region5: #{tpu_custom_call.1} parent=1 // pred_fallthru
      _
    // Predicated region
    $region6: #{tpu_custom_call.1} parent=1 // pred_check
      _
    $region7: #{tpu_custom_call.1} parent=1 // pred_check_branch
      %29 = sbr.rel (0) target = $region9
    $region8: #{tpu_custom_call.1} parent=1 // pred_region
      %s31 = ssub.s32 1024, 1024
      %32 = vsyncadd [#allocation6], %s31
      %s33 = sshll.u32 [#allocation5], 4
      %s34 = int_to_ptr.vmem [resolvable:$true] %s33
      %39 = dma.hbm_to_vmem [thread:$0]  %s1, 1024, %s34, [#allocation6], 128, 128, 8
    $region9: #{tpu_custom_call.1} parent=1 // pred_fallthru
      _
    // Predicated region
    $region10: #{tpu_custom_call.1} parent=1 // pred_check
      _
    $region11: #{tpu_custom_call.1} parent=1 // pred_check_branch
      %41 = sbr.rel (0) target = $region13
    $region12: #{tpu_custom_call.1} parent=1 // pred_region
      _
    $region13: #{tpu_custom_call.1} parent=1 // pred_fallthru
      _
    // Predicated region
    $region14: #{tpu_custom_call.1} parent=1 // pred_check
      _
    $region15: #{tpu_custom_call.1} parent=1 // pred_check_branch
      %43 = sbr.rel (0) target = $region17
    $region16: #{tpu_custom_call.1} parent=1 // pred_region
      %s45 = ssub.s32 2048, 2048
      %46 = vsyncadd [#allocation6], %s45
      %s47 = sshll.u32 [#allocation7], 4
      %s48 = int_to_ptr.vmem [resolvable:$true] %s47
      %53 = dma.hbm_to_vmem [thread:$0]  %s3, 2048, %s48, [#allocation6], 128, 128, 8
    $region17: #{tpu_custom_call.1} parent=1 // pred_fallthru
      _
    // Predicated region
    $region18: #{tpu_custom_call.1} parent=1 // pred_check
      _
    $region19: #{tpu_custom_call.1} parent=1 // pred_check_branch
      %55 = sbr.rel (0) target = $region21
    $region20: #{tpu_custom_call.1} parent=1 // pred_region
      _
    $region21: #{tpu_custom_call.1} parent=1 // pred_fallthru
      _
    // Predicated region
    $region22: #{tpu_custom_call.1} parent=1 // pred_check
      _
    $region23: #{tpu_custom_call.1} parent=1 // pred_check_branch
      %57 = sbr.rel (0) target = $region25
    $region24: #{tpu_custom_call.1} parent=1 // pred_region
      %s59 = ssub.s32 2048, 2048
      %60 = vsyncadd [#allocation9], %s59
      %s61 = sshll.u32 [#allocation8], 4
      %s62 = int_to_ptr.vmem [resolvable:$true] %s61
      %67 = dma.hbm_to_vmem [thread:$0]  %s5, 2048, %s62, [#allocation9], 128, 128, 8
    $region25: #{tpu_custom_call.1} parent=1 // pred_fallthru
      _
    // Predicated region
    $region26: #{tpu_custom_call.1} parent=1 // pred_check
      _
    $region27: #{tpu_custom_call.1} parent=1 // pred_check_branch
      %69 = sbr.rel (0) target = $region29
    $region28: #{tpu_custom_call.1} parent=1 // pred_region
      _
    $region29: #{tpu_custom_call.1} parent=1 // pred_fallthru
      _
    // Predicated region
    $region30: #{tpu_custom_call.1} parent=1 // pred_check
      _
    $region31: #{tpu_custom_call.1} parent=1 // pred_check_branch
      %71 = sbr.rel (0) target = $region33
    $region32: #{tpu_custom_call.1} parent=1 // pred_region
      %s73 = ssub.s32 2048, 2048
      %74 = vsyncadd [#allocation9], %s73
      %s75 = sshll.u32 [#allocation10], 4
      %s76 = int_to_ptr.vmem [resolvable:$true] %s75
      %81 = dma.hbm_to_vmem [thread:$0]  %s7, 2048, %s76, [#allocation9], 128, 128, 8
    $region33: #{tpu_custom_call.1} parent=1 // pred_fallthru
      _
    // Predicated region
    $region34: #{tpu_custom_call.1} parent=1 // pred_check
      _
    $region35: #{tpu_custom_call.1} parent=1 // pred_check_branch
      %83 = sbr.rel (0) target = $region37
    $region36: #{tpu_custom_call.1} parent=1 // pred_region
      _
    $region37: #{tpu_custom_call.1} parent=1 // pred_fallthru
      _
    // Predicated region
    $region38: #{tpu_custom_call.1} parent=1 // pred_check
      _
    $region39: #{tpu_custom_call.1} parent=1 // pred_check_branch
      %85 = sbr.rel (0) target = $region41
    $region40: #{tpu_custom_call.1} parent=1 // pred_region
      %86 = dma.done [#allocation3], 32
    $region41: #{tpu_custom_call.1} parent=1 // pred_fallthru
      _
    // Predicated region
    $region42: #{tpu_custom_call.1} parent=1 // pred_check
      _
    $region43: #{tpu_custom_call.1} parent=1 // pred_check_branch
      %88 = sbr.rel (0) target = $region45
    $region44: #{tpu_custom_call.1} parent=1 // pred_region
      %89 = dma.done [#allocation6], 1024
    $region45: #{tpu_custom_call.1} parent=1 // pred_fallthru
      _
    // Predicated region
    $region46: #{tpu_custom_call.1} parent=1 // pred_check
      _
    $region47: #{tpu_custom_call.1} parent=1 // pred_check_branch
      %91 = sbr.rel (0) target = $region49
    $region48: #{tpu_custom_call.1} parent=1 // pred_region
      %92 = dma.done [#allocation6], 2048
    $region49: #{tpu_custom_call.1} parent=1 // pred_fallthru
      _
    // Predicated region
    $region50: #{tpu_custom_call.1} parent=1 // pred_check
      _
    $region51: #{tpu_custom_call.1} parent=1 // pred_check_branch
      %94 = sbr.rel (0) target = $region53
    $region52: #{tpu_custom_call.1} parent=1 // pred_region
      %95 = dma.done [#allocation9], 2048
    $region53: #{tpu_custom_call.1} parent=1 // pred_fallthru
      _
    // Predicated region
    $region54: #{tpu_custom_call.1} parent=1 // pred_check
      _
    $region55: #{tpu_custom_call.1} parent=1 // pred_check_branch
      %97 = sbr.rel (0) target = $region57
    $region56: #{tpu_custom_call.1} parent=1 // pred_region
      %98 = dma.done [#allocation9], 2048
    $region57: #{tpu_custom_call.1} parent=1 // pred_fallthru
      _
    %v99 = vld [vmem:[#allocation2] sm:$0x3]
    %v100 = vld [vmem:[#allocation5] sm:$0xff]
    %v101 = vld [vmem:[#allocation5 + $0x8] sm:$0xff]
    %v102 = vld [vmem:[#allocation5 + $0x10] sm:$0xff]
    %v103 = vld [vmem:[#allocation5 + $0x18] sm:$0xff]
    %v104 = vld [vmem:[#allocation5 + $0x20] sm:$0xff]
    %v105 = vld [vmem:[#allocation5 + $0x28] sm:$0xff]
    %v106 = vld [vmem:[#allocation5 + $0x30] sm:$0xff]
    %v107 = vld [vmem:[#allocation5 + $0x38] sm:$0xff]
    %v108 = vld [vmem:[%s2] sm:$0x1]
    %v110 = vlaneseq
    %v111 = vshrl.u32 %v110, 7
    %v112 = vsub.s32 0, %v111
    %v113 = vrot.slane %v108, %v112
    %vm115 = vcmask 523264
    %v117 = vsel %vm115, %v99, 0
    %119 = vmatprep.subr.mxu0 0.0
    %120 = vmatpush1.msra.mxu0 0.0
    %121 = vmatprep.subr.mxu0 0.0
    %122 = vmatpush1.msra.mxu0 0.0
    %123 = vmatprep.subr.mxu0 0.0
    %124 = vmatpush1.msra.mxu0 0.0
    %125 = vmatprep.subr.mxu0 0.0
    %126 = vmatpush1.msra.mxu0 0.0
    %127 = vmatprep.subr.mxu0 0.0
    %128 = vmatpush1.msra.mxu0 0.0
    %129 = vmatprep.subr.mxu0 0.0
    %130 = vmatpush1.msra.mxu0 0.0
    %131 = vmatprep.subr.mxu0 0.0
    %132 = vmatpush1.msra.mxu0 0.0
    %133 = vmatprep.subr.mxu0 0.0
    %134 = vmatpush1.msra.mxu0 0.0
    %135 = vmatprep.subr.mxu0 0.0
    %136 = vmatpush1.msra.mxu0 %v107
    %137 = vmatprep.subr.mxu0 0.0
    %138 = vmatpush1.msra.mxu0 %v106
    %139 = vmatprep.subr.mxu0 0.0
    %140 = vmatpush1.msra.mxu0 %v105
    %141 = vmatprep.subr.mxu0 0.0
    %142 = vmatpush1.msra.mxu0 %v104
    %143 = vmatprep.subr.mxu0 0.0
    %144 = vmatpush1.msra.mxu0 %v103
    %145 = vmatprep.subr.mxu0 0.0
    %146 = vmatpush1.msra.mxu0 %v102
    %147 = vmatprep.subr.mxu0 0.0
    %148 = vmatpush1.msra.mxu0 %v101
    %149 = vmatprep.subr.mxu0 0.0
    %150 = vmatpush1.msra.mxu0 %v100
    %151 = vmatprep.subr.mxu0 0.0
    %152 = vmatpush2.msra.mxu0 0.0
    %153 = vmatprep.subr.mxu0 0.0
    %154 = vmatpush2.msra.mxu0 0.0
    %155 = vmatprep.subr.mxu0 0.0
    %156 = vmatpush2.msra.mxu0 0.0
    %157 = vmatprep.subr.mxu0 0.0
    %158 = vmatpush2.msra.mxu0 0.0
    %159 = vmatprep.subr.mxu0 0.0
    %160 = vmatpush2.msra.mxu0 0.0
    %161 = vmatprep.subr.mxu0 0.0
    %162 = vmatpush2.msra.mxu0 0.0
    %163 = vmatprep.subr.mxu0 0.0
    %164 = vmatpush2.msra.mxu0 0.0
    %165 = vmatprep.subr.mxu0 0.0
    %166 = vmatpush2.msra.mxu0 0.0
    %167 = vmatprep.subr.mxu0 0.0
    %168 = vmatpush2.msra.mxu0 0.0
    %169 = vmatprep.subr.mxu0 0.0
    %170 = vmatpush2.msra.mxu0 0.0
    %171 = vmatprep.subr.mxu0 0.0
    %172 = vmatpush2.msra.mxu0 0.0
    %173 = vmatprep.subr.mxu0 0.0
    %174 = vmatpush2.msra.mxu0 0.0
    %175 = vmatprep.subr.mxu0 0.0
    %176 = vmatpush2.msra.mxu0 0.0
    %177 = vmatprep.subr.mxu0 0.0
    %178 = vmatpush2.msra.mxu0 0.0
    %179 = vmatprep.subr.mxu0 0.0
    %180 = vmatpush2.msra.mxu0 0.0
    %181 = vmatprep.subr.mxu0 0.0
    %182 = vmatpush2.msra.mxu0 0.0
    %183 = vmatprep.mubr.f32.mxu0 0.0
    %184 = vmatmul.mubr.f32.gmra.mxu0 %v117
    %v185 = vpop.f32.mrf.mxu0
    %v186 = vadd.f32 %v113, %v185
    %v187 = vpop.f32.mrf.mxu0
    %188 = vdwg.mxu0
    %v189 = vmax.f32 %v186, 0.0
    %v190 = vld [vmem:[#allocation7] sm:$0xff]
    %v191 = vld [vmem:[#allocation7 + $0x8] sm:$0xff]
    %v192 = vld [vmem:[#allocation7 + $0x10] sm:$0xff]
    %v193 = vld [vmem:[#allocation7 + $0x18] sm:$0xff]
    %v194 = vld [vmem:[#allocation7 + $0x20] sm:$0xff]
    %v195 = vld [vmem:[#allocation7 + $0x28] sm:$0xff]
    %v196 = vld [vmem:[#allocation7 + $0x30] sm:$0xff]
    %v197 = vld [vmem:[#allocation7 + $0x38] sm:$0xff]
    %v198 = vld [vmem:[#allocation7 + $0x40] sm:$0xff]
    %v199 = vld [vmem:[#allocation7 + $0x48] sm:$0xff]
    %v200 = vld [vmem:[#allocation7 + $0x50] sm:$0xff]
    %v201 = vld [vmem:[#allocation7 + $0x58] sm:$0xff]
    %v202 = vld [vmem:[#allocation7 + $0x60] sm:$0xff]
    %v203 = vld [vmem:[#allocation7 + $0x68] sm:$0xff]
    %v204 = vld [vmem:[#allocation7 + $0x70] sm:$0xff]
    %v205 = vld [vmem:[#allocation7 + $0x78] sm:$0xff]
    %v206 = vld [vmem:[%s4] sm:$0x1]
    %v208 = vlaneseq
    %v209 = vshrl.u32 %v208, 7
    %v210 = vsub.s32 0, %v209
    %v211 = vrot.slane %v206, %v210
    %213 = vmatprep.subr.mxu0 0.0
    %214 = vmatpush1.msra.mxu0 %v205
    %215 = vmatprep.subr.mxu0 0.0
    %216 = vmatpush1.msra.mxu0 %v204
    %217 = vmatprep.subr.mxu0 0.0
    %218 = vmatpush1.msra.mxu0 %v203
    %219 = vmatprep.subr.mxu0 0.0
    %220 = vmatpush1.msra.mxu0 %v202
    %221 = vmatprep.subr.mxu0 0.0
    %222 = vmatpush1.msra.mxu0 %v201
    %223 = vmatprep.subr.mxu0 0.0
    %224 = vmatpush1.msra.mxu0 %v200
    %225 = vmatprep.subr.mxu0 0.0
    %226 = vmatpush1.msra.mxu0 %v199
    %227 = vmatprep.subr.mxu0 0.0
    %228 = vmatpush1.msra.mxu0 %v198
    %229 = vmatprep.subr.mxu0 0.0
    %230 = vmatpush1.msra.mxu0 %v197
    %231 = vmatprep.subr.mxu0 0.0
    %232 = vmatpush1.msra.mxu0 %v196
    %233 = vmatprep.subr.mxu0 0.0
    %234 = vmatpush1.msra.mxu0 %v195
    %235 = vmatprep.subr.mxu0 0.0
    %236 = vmatpush1.msra.mxu0 %v194
    %237 = vmatprep.subr.mxu0 0.0
    %238 = vmatpush1.msra.mxu0 %v193
    %239 = vmatprep.subr.mxu0 0.0
    %240 = vmatpush1.msra.mxu0 %v192
    %241 = vmatprep.subr.mxu0 0.0
    %242 = vmatpush1.msra.mxu0 %v191
    %243 = vmatprep.subr.mxu0 0.0
    %244 = vmatpush1.msra.mxu0 %v190
    %245 = vmatprep.subr.mxu0 0.0
    %246 = vmatpush2.msra.mxu0 0.0
    %247 = vmatprep.subr.mxu0 0.0
    %248 = vmatpush2.msra.mxu0 0.0
    %249 = vmatprep.subr.mxu0 0.0
    %250 = vmatpush2.msra.mxu0 0.0
    %251 = vmatprep.subr.mxu0 0.0
    %252 = vmatpush2.msra.mxu0 0.0
    %253 = vmatprep.subr.mxu0 0.0
    %254 = vmatpush2.msra.mxu0 0.0
    %255 = vmatprep.subr.mxu0 0.0
    %256 = vmatpush2.msra.mxu0 0.0
    %257 = vmatprep.subr.mxu0 0.0
    %258 = vmatpush2.msra.mxu0 0.0
    %259 = vmatprep.subr.mxu0 0.0
    %260 = vmatpush2.msra.mxu0 0.0
    %261 = vmatprep.subr.mxu0 0.0
    %262 = vmatpush2.msra.mxu0 0.0
    %263 = vmatprep.subr.mxu0 0.0
    %264 = vmatpush2.msra.mxu0 0.0
    %265 = vmatprep.subr.mxu0 0.0
    %266 = vmatpush2.msra.mxu0 0.0
    %267 = vmatprep.subr.mxu0 0.0
    %268 = vmatpush2.msra.mxu0 0.0
    %269 = vmatprep.subr.mxu0 0.0
    %270 = vmatpush2.msra.mxu0 0.0
    %271 = vmatprep.subr.mxu0 0.0
    %272 = vmatpush2.msra.mxu0 0.0
    %273 = vmatprep.subr.mxu0 0.0
    %274 = vmatpush2.msra.mxu0 0.0
    %275 = vmatprep.subr.mxu0 0.0
    %276 = vmatpush2.msra.mxu0 0.0
    %277 = vmatprep.mubr.f32.mxu0 0.0
    %278 = vmatmul.mubr.f32.gmra.mxu0 %v189
    %v279 = vpop.f32.mrf.mxu0
    %v280 = vadd.f32 %v211, %v279
    %v281 = vpop.f32.mrf.mxu0
    %282 = vdwg.mxu0
    %v283 = vmax.f32 %v280, 0.0
    %v284 = vld [vmem:[#allocation8] sm:$0xff]
    %v285 = vld [vmem:[#allocation8 + $0x8] sm:$0xff]
    %v286 = vld [vmem:[#allocation8 + $0x10] sm:$0xff]
    %v287 = vld [vmem:[#allocation8 + $0x18] sm:$0xff]
    %v288 = vld [vmem:[#allocation8 + $0x20] sm:$0xff]
    %v289 = vld [vmem:[#allocation8 + $0x28] sm:$0xff]
    %v290 = vld [vmem:[#allocation8 + $0x30] sm:$0xff]
    %v291 = vld [vmem:[#allocation8 + $0x38] sm:$0xff]
    %v292 = vld [vmem:[#allocation8 + $0x40] sm:$0xff]
    %v293 = vld [vmem:[#allocation8 + $0x48] sm:$0xff]
    %v294 = vld [vmem:[#allocation8 + $0x50] sm:$0xff]
    %v295 = vld [vmem:[#allocation8 + $0x58] sm:$0xff]
    %v296 = vld [vmem:[#allocation8 + $0x60] sm:$0xff]
    %v297 = vld [vmem:[#allocation8 + $0x68] sm:$0xff]
    %v298 = vld [vmem:[#allocation8 + $0x70] sm:$0xff]
    %v299 = vld [vmem:[#allocation8 + $0x78] sm:$0xff]
    %v300 = vld [vmem:[%s6] sm:$0x1]
    %v302 = vlaneseq
    %v303 = vshrl.u32 %v302, 7
    %v304 = vsub.s32 0, %v303
    %v305 = vrot.slane %v300, %v304
    %307 = vmatprep.subr.mxu0 0.0
    %308 = vmatpush1.msra.mxu0 %v299
    %309 = vmatprep.subr.mxu0 0.0
    %310 = vmatpush1.msra.mxu0 %v298
    %311 = vmatprep.subr.mxu0 0.0
    %312 = vmatpush1.msra.mxu0 %v297
    %313 = vmatprep.subr.mxu0 0.0
    %314 = vmatpush1.msra.mxu0 %v296
    %315 = vmatprep.subr.mxu0 0.0
    %316 = vmatpush1.msra.mxu0 %v295
    %317 = vmatprep.subr.mxu0 0.0
    %318 = vmatpush1.msra.mxu0 %v294
    %319 = vmatprep.subr.mxu0 0.0
    %320 = vmatpush1.msra.mxu0 %v293
    %321 = vmatprep.subr.mxu0 0.0
    %322 = vmatpush1.msra.mxu0 %v292
    %323 = vmatprep.subr.mxu0 0.0
    %324 = vmatpush1.msra.mxu0 %v291
    %325 = vmatprep.subr.mxu0 0.0
    %326 = vmatpush1.msra.mxu0 %v290
    %327 = vmatprep.subr.mxu0 0.0
    %328 = vmatpush1.msra.mxu0 %v289
    %329 = vmatprep.subr.mxu0 0.0
    %330 = vmatpush1.msra.mxu0 %v288
    %331 = vmatprep.subr.mxu0 0.0
    %332 = vmatpush1.msra.mxu0 %v287
    %333 = vmatprep.subr.mxu0 0.0
    %334 = vmatpush1.msra.mxu0 %v286
    %335 = vmatprep.subr.mxu0 0.0
    %336 = vmatpush1.msra.mxu0 %v285
    %337 = vmatprep.subr.mxu0 0.0
    %338 = vmatpush1.msra.mxu0 %v284
    %339 = vmatprep.subr.mxu0 0.0
    %340 = vmatpush2.msra.mxu0 0.0
    %341 = vmatprep.subr.mxu0 0.0
    %342 = vmatpush2.msra.mxu0 0.0
    %343 = vmatprep.subr.mxu0 0.0
    %344 = vmatpush2.msra.mxu0 0.0
    %345 = vmatprep.subr.mxu0 0.0
    %346 = vmatpush2.msra.mxu0 0.0
    %347 = vmatprep.subr.mxu0 0.0
    %348 = vmatpush2.msra.mxu0 0.0
    %349 = vmatprep.subr.mxu0 0.0
    %350 = vmatpush2.msra.mxu0 0.0
    %351 = vmatprep.subr.mxu0 0.0
    %352 = vmatpush2.msra.mxu0 0.0
    %353 = vmatprep.subr.mxu0 0.0
    %354 = vmatpush2.msra.mxu0 0.0
    %355 = vmatprep.subr.mxu0 0.0
    %356 = vmatpush2.msra.mxu0 0.0
    %357 = vmatprep.subr.mxu0 0.0
    %358 = vmatpush2.msra.mxu0 0.0
    %359 = vmatprep.subr.mxu0 0.0
    %360 = vmatpush2.msra.mxu0 0.0
    %361 = vmatprep.subr.mxu0 0.0
    %362 = vmatpush2.msra.mxu0 0.0
    %363 = vmatprep.subr.mxu0 0.0
    %364 = vmatpush2.msra.mxu0 0.0
    %365 = vmatprep.subr.mxu0 0.0
    %366 = vmatpush2.msra.mxu0 0.0
    %367 = vmatprep.subr.mxu0 0.0
    %368 = vmatpush2.msra.mxu0 0.0
    %369 = vmatprep.subr.mxu0 0.0
    %370 = vmatpush2.msra.mxu0 0.0
    %371 = vmatprep.mubr.f32.mxu0 0.0
    %372 = vmatmul.mubr.f32.gmra.mxu0 %v283
    %v373 = vpop.f32.mrf.mxu0
    %v374 = vadd.f32 %v305, %v373
    %v375 = vpop.f32.mrf.mxu0
    %376 = vdwg.mxu0
    %v377 = vmax.f32 %v374, 0.0
    %v378 = vld [vmem:[#allocation10] sm:$0xff]
    %v379 = vld [vmem:[#allocation10 + $0x8] sm:$0xff]
    %v380 = vld [vmem:[#allocation10 + $0x10] sm:$0xff]
    %v381 = vld [vmem:[#allocation10 + $0x18] sm:$0xff]
    %v382 = vld [vmem:[#allocation10 + $0x20] sm:$0xff]
    %v383 = vld [vmem:[#allocation10 + $0x28] sm:$0xff]
    %v384 = vld [vmem:[#allocation10 + $0x30] sm:$0xff]
    %v385 = vld [vmem:[#allocation10 + $0x38] sm:$0xff]
    %v386 = vld [vmem:[#allocation10 + $0x40] sm:$0xff]
    %v387 = vld [vmem:[#allocation10 + $0x48] sm:$0xff]
    %v388 = vld [vmem:[#allocation10 + $0x50] sm:$0xff]
    %v389 = vld [vmem:[#allocation10 + $0x58] sm:$0xff]
    %v390 = vld [vmem:[#allocation10 + $0x60] sm:$0xff]
    %v391 = vld [vmem:[#allocation10 + $0x68] sm:$0xff]
    %v392 = vld [vmem:[#allocation10 + $0x70] sm:$0xff]
    %v393 = vld [vmem:[#allocation10 + $0x78] sm:$0xff]
    %v394 = vld [vmem:[%s8] sm:$0x1]
    %v396 = vlaneseq
    %v397 = vshrl.u32 %v396, 7
    %v398 = vsub.s32 0, %v397
    %v399 = vrot.slane %v394, %v398
    %401 = vmatprep.subr.mxu0 0.0
    %402 = vmatpush1.msra.mxu0 %v393
    %403 = vmatprep.subr.mxu0 0.0
    %404 = vmatpush1.msra.mxu0 %v392
    %405 = vmatprep.subr.mxu0 0.0
    %406 = vmatpush1.msra.mxu0 %v391
    %407 = vmatprep.subr.mxu0 0.0
    %408 = vmatpush1.msra.mxu0 %v390
    %409 = vmatprep.subr.mxu0 0.0
    %410 = vmatpush1.msra.mxu0 %v389
    %411 = vmatprep.subr.mxu0 0.0
    %412 = vmatpush1.msra.mxu0 %v388
    %413 = vmatprep.subr.mxu0 0.0
    %414 = vmatpush1.msra.mxu0 %v387
    %415 = vmatprep.subr.mxu0 0.0
    %416 = vmatpush1.msra.mxu0 %v386
    %417 = vmatprep.subr.mxu0 0.0
    %418 = vmatpush1.msra.mxu0 %v385
    %419 = vmatprep.subr.mxu0 0.0
    %420 = vmatpush1.msra.mxu0 %v384
    %421 = vmatprep.subr.mxu0 0.0
    %422 = vmatpush1.msra.mxu0 %v383
    %423 = vmatprep.subr.mxu0 0.0
    %424 = vmatpush1.msra.mxu0 %v382
    %425 = vmatprep.subr.mxu0 0.0
    %426 = vmatpush1.msra.mxu0 %v381
    %427 = vmatprep.subr.mxu0 0.0
    %428 = vmatpush1.msra.mxu0 %v380
    %429 = vmatprep.subr.mxu0 0.0
    %430 = vmatpush1.msra.mxu0 %v379
    %431 = vmatprep.subr.mxu0 0.0
    %432 = vmatpush1.msra.mxu0 %v378
    %433 = vmatprep.subr.mxu0 0.0
    %434 = vmatpush2.msra.mxu0 0.0
    %435 = vmatprep.subr.mxu0 0.0
    %436 = vmatpush2.msra.mxu0 0.0
    %437 = vmatprep.subr.mxu0 0.0
    %438 = vmatpush2.msra.mxu0 0.0
    %439 = vmatprep.subr.mxu0 0.0
    %440 = vmatpush2.msra.mxu0 0.0
    %441 = vmatprep.subr.mxu0 0.0
    %442 = vmatpush2.msra.mxu0 0.0
    %443 = vmatprep.subr.mxu0 0.0
    %444 = vmatpush2.msra.mxu0 0.0
    %445 = vmatprep.subr.mxu0 0.0
    %446 = vmatpush2.msra.mxu0 0.0
    %447 = vmatprep.subr.mxu0 0.0
    %448 = vmatpush2.msra.mxu0 0.0
    %449 = vmatprep.subr.mxu0 0.0
    %450 = vmatpush2.msra.mxu0 0.0
    %451 = vmatprep.subr.mxu0 0.0
    %452 = vmatpush2.msra.mxu0 0.0
    %453 = vmatprep.subr.mxu0 0.0
    %454 = vmatpush2.msra.mxu0 0.0
    %455 = vmatprep.subr.mxu0 0.0
    %456 = vmatpush2.msra.mxu0 0.0
    %457 = vmatprep.subr.mxu0 0.0
    %458 = vmatpush2.msra.mxu0 0.0
    %459 = vmatprep.subr.mxu0 0.0
    %460 = vmatpush2.msra.mxu0 0.0
    %461 = vmatprep.subr.mxu0 0.0
    %462 = vmatpush2.msra.mxu0 0.0
    %463 = vmatprep.subr.mxu0 0.0
    %464 = vmatpush2.msra.mxu0 0.0
    %465 = vmatprep.mubr.f32.mxu0 0.0
    %466 = vmatmul.mubr.f32.gmra.mxu0 %v377
    %v467 = vpop.f32.mrf.mxu0
    %v468 = vadd.f32 %v399, %v467
    %v469 = vpop.f32.mrf.mxu0
    %470 = vdwg.mxu0
    %471 = vst [vmem:[#allocation11] sm:$0x3] %v468
    // Predicated region
    $region58: #{tpu_custom_call.1} parent=1 // pred_check
      _
    $region59: #{tpu_custom_call.1} parent=1 // pred_check_branch
      %473 = sbr.rel (0) target = $region61
    $region60: #{tpu_custom_call.1} parent=1 // pred_region
      %s475 = ssub.s32 32, 32
      %476 = vsyncadd [#allocation4], %s475
      %s478 = sshll.u32 [#allocation11], 4
      %s479 = int_to_ptr.vmem [resolvable:$true] %s478
      %481 = dma.vmem_to_hbm [thread:$0]  %s479, 32, %s9, [#allocation4]
    $region61: #{tpu_custom_call.1} parent=1 // pred_fallthru
      _
    // Predicated region
    $region62: #{tpu_custom_call.1} parent=1 // pred_check
      _
    $region63: #{tpu_custom_call.1} parent=1 // pred_check_branch
      %483 = sbr.rel (0) target = $region65
    $region64: #{tpu_custom_call.1} parent=1 // pred_region
      %484 = dma.done [#allocation4], 32
    $region65: #{tpu_custom_call.1} parent=1 // pred_fallthru
      _
    %485 = vsyncpa [#allocation3], 1
    %486 = vsyncpa [#allocation6], 1
    %487 = vsyncpa [#allocation9], 1
    %488 = vsyncpa [#allocation4], 1

// kernel: tpu_custom_call.1
$region0: #{tpu_custom_call.1}
  #allocation0 [shape = 'u32[]', space=smem, size = 0x4, offset = 0x4, fixed_abs, tag = 'smem constant byte address 0x4 - core index']
  #allocation1 [shape = 'u32[144,128]{1,0:T(1,128)}', space=vmem, size = 0x12000, scoped, tag = 'internal scratch']
  %s0 = inlined_call_operand.hbm [shape: f32[2,64], index: 0, kind: input, shape index: {}]
  %s1 = inlined_call_operand.hbm [shape: f32[64,128], index: 1, kind: input, shape index: {}]
  %s2 = inlined_call_operand.vmem [shape: f32[1,128], index: 2, kind: input, shape index: {}]
  %s3 = inlined_call_operand.hbm [shape: f32[128,128], index: 3, kind: input, shape index: {}]
  %s4 = inlined_call_operand.vmem [shape: f32[1,128], index: 4, kind: input, shape index: {}]
  %s5 = inlined_call_operand.hbm [shape: f32[128,128], index: 5, kind: input, shape index: {}]
  %s6 = inlined_call_operand.vmem [shape: f32[1,128], index: 6, kind: input, shape index: {}]
  %s7 = inlined_call_operand.hbm [shape: f32[128,128], index: 7, kind: input, shape index: {}]
  %s8 = inlined_call_operand.vmem [shape: f32[1,128], index: 8, kind: input, shape index: {}]
  %s9 = inlined_call_operand.hbm [shape: f32[2,128], index: 9, kind: output, shape index: {}]
  %s10 = sld [smem:[#allocation0]]
  $region66: #{tpu_custom_call.1} parent=0
    _
  %s12 = ssub.s32 1, %s10
  %s13 = scalar_select 0, %s12, %s10
  $region1: #{tpu_custom_call.1} parent=0
    #allocation2 [shape = 'u8[1024]{0}', space=vmem, size = 0x400, scoped, tag = 'input window, operand 0, single buffered']
    #allocation3 [shape = 's32[1]{0}', space=sflag, size = 0x4, scoped, tag = 'scoped memory for tpu_custom_call.1']
    #allocation4 [shape = 's32[1]{0}', space=sflag, size = 0x4, scoped, tag = 'scoped memory for tpu_custom_call.1']
    #allocation5 [shape = 'u8[32768]{0}', space=vmem, size = 0x8000, scoped, tag = 'input window, operand 1, single buffered']
    #allocation6 [shape = 's32[1]{0}', space=sflag, size = 0x4, scoped, tag = 'scoped memory for tpu_custom_call.1']
    #allocation7 [shape = 'u8[65536]{0}', space=vmem, size = 0x10000, scoped, tag = 'input window, operand 3, single buffered']
    #allocation8 [shape = 'u8[65536]{0}', space=vmem, size = 0x10000, scoped, tag = 'input window, operand 5, single buffered']
    #allocation9 [shape = 's32[1]{0}', space=sflag, size = 0x4, scoped, tag = 'scoped memory for tpu_custom_call.1']
    #allocation10 [shape = 'u8[65536]{0}', space=vmem, size = 0x10000, scoped, tag = 'input window, operand 7, single buffered']
    #allocation11 [shape = 'u8[1024]{0}', space=vmem, size = 0x400, scoped, tag = 'output window, operand 0, single buffered']
    %14 = vsyncpa [#allocation3], 0
    %15 = vsyncpa [#allocation6], 0
    %16 = vsyncpa [#allocation9], 0
    %17 = vsyncpa [#allocation4], 0
    // Predicated region
    $region2: #{tpu_custom_call.1} parent=1 // pred_check
      _
    $region3: #{tpu_custom_call.1} parent=1 // pred_check_branch
      %19 = sbr.rel (0) target = $region5
    $region4: #{tpu_custom_call.1} parent=1 // pred_region
      %s21 = ssub.s32 32, 32
      %22 = vsyncadd [#allocation3], %s21
      %s24 = sshll.u32 [#allocation2], 4
      %s25 = int_to_ptr.vmem [resolvable:$true] %s24
      %27 = dma.hbm_to_vmem [thread:$0]  %s0, 32, %s25, [#allocation3]
    $region5: #{tpu_custom_call.1} parent=1 // pred_fallthru
      _
    // Predicated region
    $region6: #{tpu_custom_call.1} parent=1 // pred_check
      _
    $region7: #{tpu_custom_call.1} parent=1 // pred_check_branch
      %29 = sbr.rel (0) target = $region9
    $region8: #{tpu_custom_call.1} parent=1 // pred_region
      %s31 = ssub.s32 1024, 1024
      %32 = vsyncadd [#allocation6], %s31
      %s33 = sshll.u32 [#allocation5], 4
      %s34 = int_to_ptr.vmem [resolvable:$true] %s33
      %39 = dma.hbm_to_vmem [thread:$0]  %s1, 1024, %s34, [#allocation6], 128, 128, 8
    $region9: #{tpu_custom_call.1} parent=1 // pred_fallthru
      _
    // Predicated region
    $region10: #{tpu_custom_call.1} parent=1 // pred_check
      _
    $region11: #{tpu_custom_call.1} parent=1 // pred_check_branch
      %41 = sbr.rel (0) target = $region13
    $region12: #{tpu_custom_call.1} parent=1 // pred_region
      _
    $region13: #{tpu_custom_call.1} parent=1 // pred_fallthru
      _
    // Predicated region
    $region14: #{tpu_custom_call.1} parent=1 // pred_check
      _
    $region15: #{tpu_custom_call.1} parent=1 // pred_check_branch
      %43 = sbr.rel (0) target = $region17
    $region16: #{tpu_custom_call.1} parent=1 // pred_region
      %s45 = ssub.s32 2048, 2048
      %46 = vsyncadd [#allocation6], %s45
      %s47 = sshll.u32 [#allocation7], 4
      %s48 = int_to_ptr.vmem [resolvable:$true] %s47
      %53 = dma.hbm_to_vmem [thread:$0]  %s3, 2048, %s48, [#allocation6], 128, 128, 8
    $region17: #{tpu_custom_call.1} parent=1 // pred_fallthru
      _
    // Predicated region
    $region18: #{tpu_custom_call.1} parent=1 // pred_check
      _
    $region19: #{tpu_custom_call.1} parent=1 // pred_check_branch
      %55 = sbr.rel (0) target = $region21
    $region20: #{tpu_custom_call.1} parent=1 // pred_region
      _
    $region21: #{tpu_custom_call.1} parent=1 // pred_fallthru
      _
    // Predicated region
    $region22: #{tpu_custom_call.1} parent=1 // pred_check
      _
    $region23: #{tpu_custom_call.1} parent=1 // pred_check_branch
      %57 = sbr.rel (0) target = $region25
    $region24: #{tpu_custom_call.1} parent=1 // pred_region
      %s59 = ssub.s32 2048, 2048
      %60 = vsyncadd [#allocation9], %s59
      %s61 = sshll.u32 [#allocation8], 4
      %s62 = int_to_ptr.vmem [resolvable:$true] %s61
      %67 = dma.hbm_to_vmem [thread:$0]  %s5, 2048, %s62, [#allocation9], 128, 128, 8
    $region25: #{tpu_custom_call.1} parent=1 // pred_fallthru
      _
    // Predicated region
    $region26: #{tpu_custom_call.1} parent=1 // pred_check
      _
    $region27: #{tpu_custom_call.1} parent=1 // pred_check_branch
      %69 = sbr.rel (0) target = $region29
    $region28: #{tpu_custom_call.1} parent=1 // pred_region
      _
    $region29: #{tpu_custom_call.1} parent=1 // pred_fallthru
      _
    // Predicated region
    $region30: #{tpu_custom_call.1} parent=1 // pred_check
      _
    $region31: #{tpu_custom_call.1} parent=1 // pred_check_branch
      %71 = sbr.rel (0) target = $region33
    $region32: #{tpu_custom_call.1} parent=1 // pred_region
      %s73 = ssub.s32 2048, 2048
      %74 = vsyncadd [#allocation9], %s73
      %s75 = sshll.u32 [#allocation10], 4
      %s76 = int_to_ptr.vmem [resolvable:$true] %s75
      %81 = dma.hbm_to_vmem [thread:$0]  %s7, 2048, %s76, [#allocation9], 128, 128, 8
    $region33: #{tpu_custom_call.1} parent=1 // pred_fallthru
      _
    // Predicated region
    $region34: #{tpu_custom_call.1} parent=1 // pred_check
      _
    $region35: #{tpu_custom_call.1} parent=1 // pred_check_branch
      %83 = sbr.rel (0) target = $region37
    $region36: #{tpu_custom_call.1} parent=1 // pred_region
      _
    $region37: #{tpu_custom_call.1} parent=1 // pred_fallthru
      _
    // Predicated region
    $region38: #{tpu_custom_call.1} parent=1 // pred_check
      _
    $region39: #{tpu_custom_call.1} parent=1 // pred_check_branch
      %85 = sbr.rel (0) target = $region41
    $region40: #{tpu_custom_call.1} parent=1 // pred_region
      %86 = dma.done [#allocation3], 32
    $region41: #{tpu_custom_call.1} parent=1 // pred_fallthru
      _
    // Predicated region
    $region42: #{tpu_custom_call.1} parent=1 // pred_check
      _
    $region43: #{tpu_custom_call.1} parent=1 // pred_check_branch
      %88 = sbr.rel (0) target = $region45
    $region44: #{tpu_custom_call.1} parent=1 // pred_region
      %89 = dma.done [#allocation6], 1024
    $region45: #{tpu_custom_call.1} parent=1 // pred_fallthru
      _
    // Predicated region
    $region46: #{tpu_custom_call.1} parent=1 // pred_check
      _
    $region47: #{tpu_custom_call.1} parent=1 // pred_check_branch
      %91 = sbr.rel (0) target = $region49
    $region48: #{tpu_custom_call.1} parent=1 // pred_region
      %92 = dma.done [#allocation6], 2048
    $region49: #{tpu_custom_call.1} parent=1 // pred_fallthru
      _
    // Predicated region
    $region50: #{tpu_custom_call.1} parent=1 // pred_check
      _
    $region51: #{tpu_custom_call.1} parent=1 // pred_check_branch
      %94 = sbr.rel (0) target = $region53
    $region52: #{tpu_custom_call.1} parent=1 // pred_region
      %95 = dma.done [#allocation9], 2048
    $region53: #{tpu_custom_call.1} parent=1 // pred_fallthru
      _
    // Predicated region
    $region54: #{tpu_custom_call.1} parent=1 // pred_check
      _
    $region55: #{tpu_custom_call.1} parent=1 // pred_check_branch
      %97 = sbr.rel (0) target = $region57
    $region56: #{tpu_custom_call.1} parent=1 // pred_region
      %98 = dma.done [#allocation9], 2048
    $region57: #{tpu_custom_call.1} parent=1 // pred_fallthru
      _
    %v99 = vld [vmem:[#allocation2] sm:$0x3]
    %v100 = vld [vmem:[#allocation5] sm:$0xff]
    %v101 = vld [vmem:[#allocation5 + $0x8] sm:$0xff]
    %v102 = vld [vmem:[#allocation5 + $0x10] sm:$0xff]
    %v103 = vld [vmem:[#allocation5 + $0x18] sm:$0xff]
    %v104 = vld [vmem:[#allocation5 + $0x20] sm:$0xff]
    %v105 = vld [vmem:[#allocation5 + $0x28] sm:$0xff]
    %v106 = vld [vmem:[#allocation5 + $0x30] sm:$0xff]
    %v107 = vld [vmem:[#allocation5 + $0x38] sm:$0xff]
    %v108 = vld [vmem:[%s2] sm:$0x1]
    %v110 = vlaneseq
    %v111 = vshrl.u32 %v110, 7
    %v112 = vsub.s32 0, %v111
    %v113 = vrot.slane %v108, %v112
    %vm115 = vcmask 523264
    %v117 = vsel %vm115, %v99, 0
    %119 = vmatprep.subr.mxu0 0.0
    %120 = vmatpush1.msra.mxu0 0.0
    %121 = vmatprep.subr.mxu0 0.0
    %122 = vmatpush1.msra.mxu0 0.0
    %123 = vmatprep.subr.mxu0 0.0
    %124 = vmatpush1.msra.mxu0 0.0
    %125 = vmatprep.subr.mxu0 0.0
    %126 = vmatpush1.msra.mxu0 0.0
    %127 = vmatprep.subr.mxu0 0.0
    %128 = vmatpush1.msra.mxu0 0.0
    %129 = vmatprep.subr.mxu0 0.0
    %130 = vmatpush1.msra.mxu0 0.0
    %131 = vmatprep.subr.mxu0 0.0
    %132 = vmatpush1.msra.mxu0 0.0
    %133 = vmatprep.subr.mxu0 0.0
    %134 = vmatpush1.msra.mxu0 0.0
    %135 = vmatprep.subr.mxu0 0.0
    %136 = vmatpush1.msra.mxu0 %v107
    %137 = vmatprep.subr.mxu0 0.0
    %138 = vmatpush1.msra.mxu0 %v106
    %139 = vmatprep.subr.mxu0 0.0
    %140 = vmatpush1.msra.mxu0 %v105
    %141 = vmatprep.subr.mxu0 0.0
    %142 = vmatpush1.msra.mxu0 %v104
    %143 = vmatprep.subr.mxu0 0.0
    %144 = vmatpush1.msra.mxu0 %v103
    %145 = vmatprep.subr.mxu0 0.0
    %146 = vmatpush1.msra.mxu0 %v102
    %147 = vmatprep.subr.mxu0 0.0
    %148 = vmatpush1.msra.mxu0 %v101
    %149 = vmatprep.subr.mxu0 0.0
    %150 = vmatpush1.msra.mxu0 %v100
    %151 = vmatprep.subr.mxu0 0.0
    %152 = vmatpush2.msra.mxu0 0.0
    %153 = vmatprep.subr.mxu0 0.0
    %154 = vmatpush2.msra.mxu0 0.0
    %155 = vmatprep.subr.mxu0 0.0
    %156 = vmatpush2.msra.mxu0 0.0
    %157 = vmatprep.subr.mxu0 0.0
    %158 = vmatpush2.msra.mxu0 0.0
    %159 = vmatprep.subr.mxu0 0.0
    %160 = vmatpush2.msra.mxu0 0.0
    %161 = vmatprep.subr.mxu0 0.0
    %162 = vmatpush2.msra.mxu0 0.0
    %163 = vmatprep.subr.mxu0 0.0
    %164 = vmatpush2.msra.mxu0 0.0
    %165 = vmatprep.subr.mxu0 0.0
    %166 = vmatpush2.msra.mxu0 0.0
    %167 = vmatprep.subr.mxu0 0.0
    %168 = vmatpush2.msra.mxu0 0.0
    %169 = vmatprep.subr.mxu0 0.0
    %170 = vmatpush2.msra.mxu0 0.0
    %171 = vmatprep.subr.mxu0 0.0
    %172 = vmatpush2.msra.mxu0 0.0
    %173 = vmatprep.subr.mxu0 0.0
    %174 = vmatpush2.msra.mxu0 0.0
    %175 = vmatprep.subr.mxu0 0.0
    %176 = vmatpush2.msra.mxu0 0.0
    %177 = vmatprep.subr.mxu0 0.0
    %178 = vmatpush2.msra.mxu0 0.0
    %179 = vmatprep.subr.mxu0 0.0
    %180 = vmatpush2.msra.mxu0 0.0
    %181 = vmatprep.subr.mxu0 0.0
    %182 = vmatpush2.msra.mxu0 0.0
    %183 = vmatprep.mubr.f32.mxu0 0.0
    %184 = vmatmul.mubr.f32.gmra.mxu0 %v117
    %v185 = vpop.f32.mrf.mxu0
    %v186 = vadd.f32 %v113, %v185
    %v187 = vpop.f32.mrf.mxu0
    %188 = vdwg.mxu0
    %v189 = vmax.f32 %v186, 0.0
    %v190 = vld [vmem:[#allocation7] sm:$0xff]
    %v191 = vld [vmem:[#allocation7 + $0x8] sm:$0xff]
    %v192 = vld [vmem:[#allocation7 + $0x10] sm:$0xff]
    %v193 = vld [vmem:[#allocation7 + $0x18] sm:$0xff]
    %v194 = vld [vmem:[#allocation7 + $0x20] sm:$0xff]
    %v195 = vld [vmem:[#allocation7 + $0x28] sm:$0xff]
    %v196 = vld [vmem:[#allocation7 + $0x30] sm:$0xff]
    %v197 = vld [vmem:[#allocation7 + $0x38] sm:$0xff]
    %v198 = vld [vmem:[#allocation7 + $0x40] sm:$0xff]
    %v199 = vld [vmem:[#allocation7 + $0x48] sm:$0xff]
    %v200 = vld [vmem:[#allocation7 + $0x50] sm:$0xff]
    %v201 = vld [vmem:[#allocation7 + $0x58] sm:$0xff]
    %v202 = vld [vmem:[#allocation7 + $0x60] sm:$0xff]
    %v203 = vld [vmem:[#allocation7 + $0x68] sm:$0xff]
    %v204 = vld [vmem:[#allocation7 + $0x70] sm:$0xff]
    %v205 = vld [vmem:[#allocation7 + $0x78] sm:$0xff]
    %v206 = vld [vmem:[%s4] sm:$0x1]
    %v208 = vlaneseq
    %v209 = vshrl.u32 %v208, 7
    %v210 = vsub.s32 0, %v209
    %v211 = vrot.slane %v206, %v210
    %213 = vmatprep.subr.mxu0 0.0
    %214 = vmatpush1.msra.mxu0 %v205
    %215 = vmatprep.subr.mxu0 0.0
    %216 = vmatpush1.msra.mxu0 %v204
    %217 = vmatprep.subr.mxu0 0.0
    %218 = vmatpush1.msra.mxu0 %v203
    %219 = vmatprep.subr.mxu0 0.0
    %220 = vmatpush1.msra.mxu0 %v202
    %221 = vmatprep.subr.mxu0 0.0
    %222 = vmatpush1.msra.mxu0 %v201
    %223 = vmatprep.subr.mxu0 0.0
    %224 = vmatpush1.msra.mxu0 %v200
    %225 = vmatprep.subr.mxu0 0.0
    %226 = vmatpush1.msra.mxu0 %v199
    %227 = vmatprep.subr.mxu0 0.0
    %228 = vmatpush1.msra.mxu0 %v198
    %229 = vmatprep.subr.mxu0 0.0
    %230 = vmatpush1.msra.mxu0 %v197
    %231 = vmatprep.subr.mxu0 0.0
    %232 = vmatpush1.msra.mxu0 %v196
    %233 = vmatprep.subr.mxu0 0.0
    %234 = vmatpush1.msra.mxu0 %v195
    %235 = vmatprep.subr.mxu0 0.0
    %236 = vmatpush1.msra.mxu0 %v194
    %237 = vmatprep.subr.mxu0 0.0
    %238 = vmatpush1.msra.mxu0 %v193
    %239 = vmatprep.subr.mxu0 0.0
    %240 = vmatpush1.msra.mxu0 %v192
    %241 = vmatprep.subr.mxu0 0.0
    %242 = vmatpush1.msra.mxu0 %v191
    %243 = vmatprep.subr.mxu0 0.0
    %244 = vmatpush1.msra.mxu0 %v190
    %245 = vmatprep.subr.mxu0 0.0
    %246 = vmatpush2.msra.mxu0 0.0
    %247 = vmatprep.subr.mxu0 0.0
    %248 = vmatpush2.msra.mxu0 0.0
    %249 = vmatprep.subr.mxu0 0.0
    %250 = vmatpush2.msra.mxu0 0.0
    %251 = vmatprep.subr.mxu0 0.0
    %252 = vmatpush2.msra.mxu0 0.0
    %253 = vmatprep.subr.mxu0 0.0
    %254 = vmatpush2.msra.mxu0 0.0
    %255 = vmatprep.subr.mxu0 0.0
    %256 = vmatpush2.msra.mxu0 0.0
    %257 = vmatprep.subr.mxu0 0.0
    %258 = vmatpush2.msra.mxu0 0.0
    %259 = vmatprep.subr.mxu0 0.0
    %260 = vmatpush2.msra.mxu0 0.0
    %261 = vmatprep.subr.mxu0 0.0
    %262 = vmatpush2.msra.mxu0 0.0
    %263 = vmatprep.subr.mxu0 0.0
    %264 = vmatpush2.msra.mxu0 0.0
    %265 = vmatprep.subr.mxu0 0.0
    %266 = vmatpush2.msra.mxu0 0.0
    %267 = vmatprep.subr.mxu0 0.0
    %268 = vmatpush2.msra.mxu0 0.0
    %269 = vmatprep.subr.mxu0 0.0
    %270 = vmatpush2.msra.mxu0 0.0
    %271 = vmatprep.subr.mxu0 0.0
    %272 = vmatpush2.msra.mxu0 0.0
    %273 = vmatprep.subr.mxu0 0.0
    %274 = vmatpush2.msra.mxu0 0.0
    %275 = vmatprep.subr.mxu0 0.0
    %276 = vmatpush2.msra.mxu0 0.0
    %277 = vmatprep.mubr.f32.mxu0 0.0
    %278 = vmatmul.mubr.f32.gmra.mxu0 %v189
    %v279 = vpop.f32.mrf.mxu0
    %v280 = vadd.f32 %v211, %v279
    %v281 = vpop.f32.mrf.mxu0
    %282 = vdwg.mxu0
    %v283 = vmax.f32 %v280, 0.0
    %v284 = vld [vmem:[#allocation8] sm:$0xff]
    %v285 = vld [vmem:[#allocation8 + $0x8] sm:$0xff]
    %v286 = vld [vmem:[#allocation8 + $0x10] sm:$0xff]
    %v287 = vld [vmem:[#allocation8 + $0x18] sm:$0xff]
    %v288 = vld [vmem:[#allocation8 + $0x20] sm:$0xff]
    %v289 = vld [vmem:[#allocation8 + $0x28] sm:$0xff]
    %v290 = vld [vmem:[#allocation8 + $0x30] sm:$0xff]
    %v291 = vld [vmem:[#allocation8 + $0x38] sm:$0xff]
    %v292 = vld [vmem:[#allocation8 + $0x40] sm:$0xff]
    %v293 = vld [vmem:[#allocation8 + $0x48] sm:$0xff]
    %v294 = vld [vmem:[#allocation8 + $0x50] sm:$0xff]
    %v295 = vld [vmem:[#allocation8 + $0x58] sm:$0xff]
    %v296 = vld [vmem:[#allocation8 + $0x60] sm:$0xff]
    %v297 = vld [vmem:[#allocation8 + $0x68] sm:$0xff]
    %v298 = vld [vmem:[#allocation8 + $0x70] sm:$0xff]
    %v299 = vld [vmem:[#allocation8 + $0x78] sm:$0xff]
    %v300 = vld [vmem:[%s6] sm:$0x1]
    %v302 = vlaneseq
    %v303 = vshrl.u32 %v302, 7
    %v304 = vsub.s32 0, %v303
    %v305 = vrot.slane %v300, %v304
    %307 = vmatprep.subr.mxu0 0.0
    %308 = vmatpush1.msra.mxu0 %v299
    %309 = vmatprep.subr.mxu0 0.0
    %310 = vmatpush1.msra.mxu0 %v298
    %311 = vmatprep.subr.mxu0 0.0
    %312 = vmatpush1.msra.mxu0 %v297
    %313 = vmatprep.subr.mxu0 0.0
    %314 = vmatpush1.msra.mxu0 %v296
    %315 = vmatprep.subr.mxu0 0.0
    %316 = vmatpush1.msra.mxu0 %v295
    %317 = vmatprep.subr.mxu0 0.0
    %318 = vmatpush1.msra.mxu0 %v294
    %319 = vmatprep.subr.mxu0 0.0
    %320 = vmatpush1.msra.mxu0 %v293
    %321 = vmatprep.subr.mxu0 0.0
    %322 = vmatpush1.msra.mxu0 %v292
    %323 = vmatprep.subr.mxu0 0.0
    %324 = vmatpush1.msra.mxu0 %v291
    %325 = vmatprep.subr.mxu0 0.0
    %326 = vmatpush1.msra.mxu0 %v290
    %327 = vmatprep.subr.mxu0 0.0
    %328 = vmatpush1.msra.mxu0 %v289
    %329 = vmatprep.subr.mxu0 0.0
    %330 = vmatpush1.msra.mxu0 %v288
    %331 = vmatprep.subr.mxu0 0.0
    %332 = vmatpush1.msra.mxu0 %v287
    %333 = vmatprep.subr.mxu0 0.0
    %334 = vmatpush1.msra.mxu0 %v286
    %335 = vmatprep.subr.mxu0 0.0
    %336 = vmatpush1.msra.mxu0 %v285
    %337 = vmatprep.subr.mxu0 0.0
    %338 = vmatpush1.msra.mxu0 %v284
    %339 = vmatprep.subr.mxu0 0.0
    %340 = vmatpush2.msra.mxu0 0.0
    %341 = vmatprep.subr.mxu0 0.0
    %342 = vmatpush2.msra.mxu0 0.0
    %343 = vmatprep.subr.mxu0 0.0
    %344 = vmatpush2.msra.mxu0 0.0
    %345 = vmatprep.subr.mxu0 0.0
    %346 = vmatpush2.msra.mxu0 0.0
    %347 = vmatprep.subr.mxu0 0.0
    %348 = vmatpush2.msra.mxu0 0.0
    %349 = vmatprep.subr.mxu0 0.0
    %350 = vmatpush2.msra.mxu0 0.0
    %351 = vmatprep.subr.mxu0 0.0
    %352 = vmatpush2.msra.mxu0 0.0
    %353 = vmatprep.subr.mxu0 0.0
    %354 = vmatpush2.msra.mxu0 0.0
    %355 = vmatprep.subr.mxu0 0.0
    %356 = vmatpush2.msra.mxu0 0.0
    %357 = vmatprep.subr.mxu0 0.0
    %358 = vmatpush2.msra.mxu0 0.0
    %359 = vmatprep.subr.mxu0 0.0
    %360 = vmatpush2.msra.mxu0 0.0
    %361 = vmatprep.subr.mxu0 0.0
    %362 = vmatpush2.msra.mxu0 0.0
    %363 = vmatprep.subr.mxu0 0.0
    %364 = vmatpush2.msra.mxu0 0.0
    %365 = vmatprep.subr.mxu0 0.0
    %366 = vmatpush2.msra.mxu0 0.0
    %367 = vmatprep.subr.mxu0 0.0
    %368 = vmatpush2.msra.mxu0 0.0
    %369 = vmatprep.subr.mxu0 0.0
    %370 = vmatpush2.msra.mxu0 0.0
    %371 = vmatprep.mubr.f32.mxu0 0.0
    %372 = vmatmul.mubr.f32.gmra.mxu0 %v283
    %v373 = vpop.f32.mrf.mxu0
    %v374 = vadd.f32 %v305, %v373
    %v375 = vpop.f32.mrf.mxu0
    %376 = vdwg.mxu0
    %v377 = vmax.f32 %v374, 0.0
    %v378 = vld [vmem:[#allocation10] sm:$0xff]
    %v379 = vld [vmem:[#allocation10 + $0x8] sm:$0xff]
    %v380 = vld [vmem:[#allocation10 + $0x10] sm:$0xff]
    %v381 = vld [vmem:[#allocation10 + $0x18] sm:$0xff]
    %v382 = vld [vmem:[#allocation10 + $0x20] sm:$0xff]
    %v383 = vld [vmem:[#allocation10 + $0x28] sm:$0xff]
    %v384 = vld [vmem:[#allocation10 + $0x30] sm:$0xff]
    %v385 = vld [vmem:[#allocation10 + $0x38] sm:$0xff]
    %v386 = vld [vmem:[#allocation10 + $0x40] sm:$0xff]
    %v387 = vld [vmem:[#allocation10 + $0x48] sm:$0xff]
    %v388 = vld [vmem:[#allocation10 + $0x50] sm:$0xff]
    %v389 = vld [vmem:[#allocation10 + $0x58] sm:$0xff]
    %v390 = vld [vmem:[#allocation10 + $0x60] sm:$0xff]
    %v391 = vld [vmem:[#allocation10 + $0x68] sm:$0xff]
    %v392 = vld [vmem:[#allocation10 + $0x70] sm:$0xff]
    %v393 = vld [vmem:[#allocation10 + $0x78] sm:$0xff]
    %v394 = vld [vmem:[%s8] sm:$0x1]
    %v396 = vlaneseq
    %v397 = vshrl.u32 %v396, 7
    %v398 = vsub.s32 0, %v397
    %v399 = vrot.slane %v394, %v398
    %401 = vmatprep.subr.mxu0 0.0
    %402 = vmatpush1.msra.mxu0 %v393
    %403 = vmatprep.subr.mxu0 0.0
    %404 = vmatpush1.msra.mxu0 %v392
    %405 = vmatprep.subr.mxu0 0.0
    %406 = vmatpush1.msra.mxu0 %v391
    %407 = vmatprep.subr.mxu0 0.0
    %408 = vmatpush1.msra.mxu0 %v390
    %409 = vmatprep.subr.mxu0 0.0
    %410 = vmatpush1.msra.mxu0 %v389
    %411 = vmatprep.subr.mxu0 0.0
    %412 = vmatpush1.msra.mxu0 %v388
    %413 = vmatprep.subr.mxu0 0.0
    %414 = vmatpush1.msra.mxu0 %v387
    %415 = vmatprep.subr.mxu0 0.0
    %416 = vmatpush1.msra.mxu0 %v386
    %417 = vmatprep.subr.mxu0 0.0
    %418 = vmatpush1.msra.mxu0 %v385
    %419 = vmatprep.subr.mxu0 0.0
    %420 = vmatpush1.msra.mxu0 %v384
    %421 = vmatprep.subr.mxu0 0.0
    %422 = vmatpush1.msra.mxu0 %v383
    %423 = vmatprep.subr.mxu0 0.0
    %424 = vmatpush1.msra.mxu0 %v382
    %425 = vmatprep.subr.mxu0 0.0
    %426 = vmatpush1.msra.mxu0 %v381
    %427 = vmatprep.subr.mxu0 0.0
    %428 = vmatpush1.msra.mxu0 %v380
    %429 = vmatprep.subr.mxu0 0.0
    %430 = vmatpush1.msra.mxu0 %v379
    %431 = vmatprep.subr.mxu0 0.0
    %432 = vmatpush1.msra.mxu0 %v378
    %433 = vmatprep.subr.mxu0 0.0
    %434 = vmatpush2.msra.mxu0 0.0
    %435 = vmatprep.subr.mxu0 0.0
    %436 = vmatpush2.msra.mxu0 0.0
    %437 = vmatprep.subr.mxu0 0.0
    %438 = vmatpush2.msra.mxu0 0.0
    %439 = vmatprep.subr.mxu0 0.0
    %440 = vmatpush2.msra.mxu0 0.0
    %441 = vmatprep.subr.mxu0 0.0
    %442 = vmatpush2.msra.mxu0 0.0
    %443 = vmatprep.subr.mxu0 0.0
    %444 = vmatpush2.msra.mxu0 0.0
    %445 = vmatprep.subr.mxu0 0.0
    %446 = vmatpush2.msra.mxu0 0.0
    %447 = vmatprep.subr.mxu0 0.0
    %448 = vmatpush2.msra.mxu0 0.0
    %449 = vmatprep.subr.mxu0 0.0
    %450 = vmatpush2.msra.mxu0 0.0
    %451 = vmatprep.subr.mxu0 0.0
    %452 = vmatpush2.msra.mxu0 0.0
    %453 = vmatprep.subr.mxu0 0.0
    %454 = vmatpush2.msra.mxu0 0.0
    %455 = vmatprep.subr.mxu0 0.0
    %456 = vmatpush2.msra.mxu0 0.0
    %457 = vmatprep.subr.mxu0 0.0
    %458 = vmatpush2.msra.mxu0 0.0
    %459 = vmatprep.subr.mxu0 0.0
    %460 = vmatpush2.msra.mxu0 0.0
    %461 = vmatprep.subr.mxu0 0.0
    %462 = vmatpush2.msra.mxu0 0.0
    %463 = vmatprep.subr.mxu0 0.0
    %464 = vmatpush2.msra.mxu0 0.0
    %465 = vmatprep.mubr.f32.mxu0 0.0
    %466 = vmatmul.mubr.f32.gmra.mxu0 %v377
    %v467 = vpop.f32.mrf.mxu0
    %v468 = vadd.f32 %v399, %v467
    %v469 = vpop.f32.mrf.mxu0
    %470 = vdwg.mxu0
    %471 = vst [vmem:[#allocation11] sm:$0x3] %v468
    // Predicated region
    $region58: #{tpu_custom_call.1} parent=1 // pred_check
      _
    $region59: #{tpu_custom_call.1} parent=1 // pred_check_branch
      %473 = sbr.rel (0) target = $region61
    $region60: #{tpu_custom_call.1} parent=1 // pred_region
      %s475 = ssub.s32 32, 32
      %476 = vsyncadd [#allocation4], %s475
      %s478 = sshll.u32 [#allocation11], 4
      %s479 = int_to_ptr.vmem [resolvable:$true] %s478
      %481 = dma.vmem_to_hbm [thread:$0]  %s479, 32, %s9, [#allocation4]
    $region61: #{tpu_custom_call.1} parent=1 // pred_fallthru
      _
    // Predicated region
    $region62: #{tpu_custom_call.1} parent=1 // pred_check
      _
    $region63: #{tpu_custom_call.1} parent=1 // pred_check_branch
      %483 = sbr.rel (0) target = $region65
    $region64: #{tpu_custom_call.1} parent=1 // pred_region
      %484 = dma.done [#allocation4], 32
    $region65: #{tpu_custom_call.1} parent=1 // pred_fallthru
      _
    %485 = vsyncpa [#allocation3], 1
    %486 = vsyncpa [#allocation6], 1
    %487 = vsyncpa [#allocation9], 1
    %488 = vsyncpa [#allocation4], 1

</llo_original>
